<compile_context>
chip_gen: v7x
topology: tpu7x:2x2x1
jax: 0.10.0
libtpu: 0.0.40
codegen_flags: <defaults>
</compile_context>

<pallas_src>
import math
import functools

import jax
import jax.numpy as jnp
from jax.experimental import pallas as pl
from jax.experimental.pallas import tpu as pltpu

_LANE = 128


def make_pe_table(n_units, max_len=5000, dtype=jnp.float32):
    """Deterministic construction of the `pe` buffer, identical to __init__."""
    position = jnp.arange(0, max_len, dtype=jnp.float32)[:, None]
    div_term = jnp.exp(jnp.arange(0, n_units, 2, dtype=jnp.float32)
                       * -(math.log(10000.0) / n_units))
    pe = jnp.zeros((max_len, n_units), dtype=jnp.float32)
    pe = pe.at[:, 0::2].set(jnp.sin(position * div_term))
    pe = pe.at[:, 1::2].set(jnp.cos(position * div_term))
    return pe.astype(dtype)


def _pe_dropout_kernel(seed_ref, x_ref, pe_ref, o_ref, *,
                       dropout_p, training, n_cols):
    # x_ref: (TB, TILE) block;  pe_ref: (1, TILE) block (broadcast over rows).
    # Same dtype everywhere -> no per-element casts on the add / select path.
    y = x_ref[...] + pe_ref[...]

    if training and dropout_p > 0.0:
        tb, tile = x_ref.shape
        # Global element index of every lane in this block (row-major over (B, N)).
        row0 = (pl.program_id(1) * tb).astype(jnp.uint32)     # batch axis = inner grid dim
        col0 = (pl.program_id(0) * tile).astype(jnp.uint32)   # column axis = outer grid dim
        rows = jax.lax.broadcasted_iota(jnp.int32, (tb, tile), 0).astype(jnp.uint32)
        cols = jax.lax.broadcasted_iota(jnp.int32, (tb, tile), 1).astype(jnp.uint32)
        idx = (row0 + rows) * jnp.uint32(n_cols) + (col0 + cols)

        # Stateless hash PRNG (jnp-only: lowers on TPU *and* runs in interpret mode).
        # Seed enters through a different multiplier and everything is avalanched,
        # so (seed, block) streams are decorrelated.
        h = idx * jnp.uint32(0x9E3779B9) \
            + seed_ref[0].astype(jnp.uint32) * jnp.uint32(0x85EBCA6B)
        h = h ^ (h >> 16)
        h = h * jnp.uint32(0x7FEB352D)
        h = h ^ (h >> 15)
        h = h * jnp.uint32(0x846CA68B)
        h = h ^ (h >> 16)

        # P(h >= thr) == 1 - p ; pure integer compare, no float convert needed.
        thr = jnp.uint32(min(int(round(dropout_p * 2.0 ** 32)), 2 ** 32 - 1))
        keep = h >= thr
        scale = jnp.asarray(1.0 / (1.0 - dropout_p), dtype=y.dtype)
        y = jnp.where(keep, y * scale, jnp.zeros_like(y))
        # TODO(synk): mask stream reproduces Bernoulli(1-p) only; it will not
        # bit-match torch's RNG.

    o_ref[...] = y


def _pick_rows(b, max_rows=64):
    """Rows per block: full B, or a multiple of 8 (sublane-dense) dividing B."""
    if b <= max_rows or b % 8 != 0:
        return b                       # full dim -> always a legal block shape
    tb = 8
    while b % (tb * 2) == 0 and tb * 2 <= max_rows:
        tb *= 2
    return tb


def _pick_tile(n, tb, itemsize, block_budget_bytes=2 << 20):
    """Largest 128-aligned column tile keeping a (tb, tile) block <= ~2 MiB."""
    if n % _LANE != 0:
        return n                       # not lane-splittable -> full row
    max_cols = block_budget_bytes // max(tb * itemsize, 1)
    max_cols = (max_cols // _LANE) * _LANE
    return int(min(n, max(max_cols, _LANE)))


def positional_encoding(x, pe_table, *, dropout_p=0.0, training=False, seed=0):
    assert 0.0 <= dropout_p < 1.0, "dropout_p must be in [0, 1)"
    B, S, D = x.shape
    N = S * D
    itemsize = x.dtype.itemsize

    # Lane-dense layout plumbing (free reshapes, no compute change).
    xf = x.reshape(B, N)
    pef = pe_table[:S, :].astype(x.dtype).reshape(1, N)   # ship pe in x.dtype

    tb = _pick_rows(B)
    tile = _pick_tile(N, tb, itemsize)
    # Column blocks OUTER, batch blocks INNER: pe's block index only changes with
    # the outer axis, so Pallas fetches each pe tile once (not once per step).
    grid = (pl.cdiv(N, tile), pl.cdiv(B, tb))

    kernel = functools.partial(_pe_dropout_kernel,
                               dropout_p=float(dropout_p),
                               training=bool(training),
                               n_cols=N)
    seed_arr = jnp.array([seed], dtype=jnp.int32)

    cost = pl.CostEstimate(
        flops=B * N,
        transcendentals=0,
        bytes_accessed=2 * B * N * itemsize + N * itemsize,
    )

    out = pl.pallas_call(
        kernel,
        out_shape=jax.ShapeDtypeStruct((B, N), x.dtype),
        grid_spec=pltpu.PrefetchScalarGridSpec(
            num_scalar_prefetch=1,                     # seed lands in SMEM
            grid=grid,                                 # (column blocks, batch blocks)
            in_specs=[
                pl.BlockSpec((tb, tile), lambda c, r, seed: (r, c)),   # x slab
                pl.BlockSpec((1, tile),  lambda c, r, seed: (0, c)),   # shared pe (outer-only)
            ],
            out_specs=pl.BlockSpec((tb, tile), lambda c, r, seed: (r, c)),
        ),
        compiler_params=pltpu.CompilerParams(
            dimension_semantics=("parallel", "parallel")),  # megacore-shardable
        cost_estimate=cost,
    )(seed_arr, xf, pef)

    return out.reshape(B, S, D)


if __name__ == "__main__":
    key = jax.random.PRNGKey(0)
    B, S, D = 2, 8, 32                          # batch=2, seq=8, n_units=32
    x = jax.random.normal(key, (B, S, D), dtype=jnp.float32)

    pe_table = make_pe_table(D, max_len=5000)

    # Eval mode (dropout inactive) — deterministic, checked against reference.
    y = positional_encoding(x, pe_table, dropout_p=0.1, training=False)
    jax.block_until_ready(y)
    ref = x + pe_table[None, :S, :]
    assert jnp.allclose(y, ref, atol=1e-5), "positional encoding mismatch"

    # Training mode — exercise the in-kernel dropout path.
    p = 0.1
    y_tr = positional_encoding(x, pe_table, dropout_p=p, training=True, seed=0)
    jax.block_until_ready(y_tr)
    drop_frac = float(jnp.mean((y_tr == 0).astype(jnp.float32)))
    assert 0.0 <= drop_frac <= 0.5, "unexpected dropout rate"
    kept = y_tr != 0
    assert jnp.allclose(jnp.where(kept, y_tr, 0.0),
                        jnp.where(kept, ref / (1.0 - p), 0.0), atol=1e-4), \
        "kept dropout values not scaled by 1/(1-p)"

    # Different seeds give different masks (stream hygiene check).
    y_tr2 = positional_encoding(x, pe_table, dropout_p=p, training=True, seed=1)
    jax.block_until_ready(y_tr2)

    print("KERNEL_OK")
</pallas_src>

<mosaic_0001>
module attributes {stable_mosaic.version = 11 : i64} {
  func.func @_pe_dropout_kernel(%arg0: i32, %arg1: i32, %arg2: memref<1xi32, #tpu.memory_space<smem>>, %arg3: memref<2x256xf32, #tpu.memory_space<vmem>>, %arg4: memref<1x256xf32, #tpu.memory_space<vmem>>, %arg5: memref<2x256xf32, #tpu.memory_space<vmem>>) attributes {dimension_semantics = [#tpu.dimension_semantics<parallel>, #tpu.dimension_semantics<parallel>], iteration_bounds = array<i64: 1, 1>, scalar_prefetch = 1 : i64, scratch_operands = 0 : i64, tpu.core_type = #tpu.core_type<tc>, window_params = [{transform_indices = @transform_0, window_bounds = array<i64: 2, 256>}, {transform_indices = @transform_1, window_bounds = array<i64: 1, 256>}, {transform_indices = @transform_2, window_bounds = array<i64: 2, 256>}]} {
    %c0 = arith.constant 0 : index
    %c0_0 = arith.constant 0 : index
    %0 = vector.load %arg3[%c0, %c0_0] : memref<2x256xf32, #tpu.memory_space<vmem>>, vector<2x256xf32>
    %c0_1 = arith.constant 0 : index
    %c0_2 = arith.constant 0 : index
    %1 = vector.load %arg4[%c0_1, %c0_2] : memref<1x256xf32, #tpu.memory_space<vmem>>, vector<1x256xf32>
    %2 = vector.broadcast %1 : vector<1x256xf32> to vector<2x256xf32>
    %3 = arith.addf %0, %2 : vector<2x256xf32>
    %c0_3 = arith.constant 0 : index
    %c0_4 = arith.constant 0 : index
    %4 = vector.load %arg5[%c0_3, %c0_4] : memref<2x256xf32, #tpu.memory_space<vmem>>, vector<2x256xf32>
    tpu.vector_store %arg5[%c0_3, %c0_4], %3 {strides = array<i32>} : memref<2x256xf32, #tpu.memory_space<vmem>>, vector<2x256xf32>,
    return
  }
  func.func @transform_0(%arg0: i32, %arg1: i32, %arg2: memref<1xi32, #tpu.memory_space<smem>>) -> (i32, i32) {
    %c0_i32 = arith.constant 0 : i32
    return %arg1, %arg0 : i32, i32
  }
  func.func @transform_1(%arg0: i32, %arg1: i32, %arg2: memref<1xi32, #tpu.memory_space<smem>>) -> (i32, i32) {
    %c0_i32 = arith.constant 0 : i32
    %c0_i32_0 = arith.constant 0 : i32
    return %c0_i32, %arg0 : i32, i32
  }
  func.func @transform_2(%arg0: i32, %arg1: i32, %arg2: memref<1xi32, #tpu.memory_space<smem>>) -> (i32, i32) {
    %c0_i32 = arith.constant 0 : i32
    return %arg1, %arg0 : i32, i32
  }
}

</mosaic_0001>

<llo_original>
// kernel: tpu_custom_call.1
$region0: #{tpu_custom_call.1}
  #allocation0 [shape = 'u32[]', space=smem, size = 0x4, offset = 0x4, fixed_abs, tag = 'smem constant byte address 0x4 - core index']
  #allocation1 [shape = 'u32[144,128]{1,0:T(1,128)}', space=vmem, size = 0x12000, scoped, tag = 'internal scratch']
  #allocation2 [shape = 's32[1]{0}', space=sflag, size = 0x4, scoped, tag = 'scoped memory for tpu_custom_call.1']
  #allocation3 [shape = 's32[1]{0:T(128)S(6)}', space=smem, size = 0x200, scoped, tag = 'prefetched SMEM operand 0']
  %s0 = inlined_call_operand.<no memory space> [shape: s32[1], index: 0, kind: input, shape index: {}]
  %s1 = inlined_call_operand.hbm [shape: f32[2,256], index: 1, kind: input, shape index: {}]
  %s2 = inlined_call_operand.vmem [shape: f32[1,256], index: 2, kind: input, shape index: {}]
  %s3 = inlined_call_operand.hbm [shape: f32[2,256], index: 3, kind: output, shape index: {}]
  %s4 = sld [smem:[#allocation0]]
  $region22: #{tpu_custom_call.1} parent=0
    _
  %s6 = ssub.s32 1, %s4
  %s7 = scalar_select 0, %s6, %s4
  %8 = sst [smem:[#allocation3]] %s0
  $region1: #{tpu_custom_call.1} parent=0
    #allocation4 [shape = 'u8[2048]{0}', space=vmem, size = 0x800, scoped, tag = 'input window, operand 1, single buffered']
    #allocation5 [shape = 's32[1]{0}', space=sflag, size = 0x4, scoped, tag = 'scoped memory for tpu_custom_call.1']
    #allocation6 [shape = 's32[1]{0}', space=sflag, size = 0x4, scoped, tag = 'scoped memory for tpu_custom_call.1']
    #allocation7 [shape = 'u8[2048]{0}', space=vmem, size = 0x800, scoped, tag = 'output window, operand 0, single buffered']
    %9 = vsyncpa [#allocation5], 0
    %10 = vsyncpa [#allocation6], 0
    // Predicated region
    $region2: #{tpu_custom_call.1} parent=1 // pred_check
      _
    $region3: #{tpu_custom_call.1} parent=1 // pred_check_branch
      %12 = sbr.rel (0) target = $region5
    $region4: #{tpu_custom_call.1} parent=1 // pred_region
      %s14 = ssub.s32 64, 64
      %15 = vsyncadd [#allocation5], %s14
      %s17 = sshll.u32 [#allocation4], 4
      %s18 = int_to_ptr.vmem [resolvable:$true] %s17
      %20 = dma.hbm_to_vmem [thread:$0]  %s1, 64, %s18, [#allocation5]
    $region5: #{tpu_custom_call.1} parent=1 // pred_fallthru
      _
    // Predicated region
    $region6: #{tpu_custom_call.1} parent=1 // pred_check
      _
    $region7: #{tpu_custom_call.1} parent=1 // pred_check_branch
      %22 = sbr.rel (0) target = $region9
    $region8: #{tpu_custom_call.1} parent=1 // pred_region
      _
    $region9: #{tpu_custom_call.1} parent=1 // pred_fallthru
      _
    // Predicated region
    $region10: #{tpu_custom_call.1} parent=1 // pred_check
      _
    $region11: #{tpu_custom_call.1} parent=1 // pred_check_branch
      %24 = sbr.rel (0) target = $region13
    $region12: #{tpu_custom_call.1} parent=1 // pred_region
      %25 = dma.done [#allocation5], 64
    $region13: #{tpu_custom_call.1} parent=1 // pred_fallthru
      _
    %v26 = vld [vmem:[#allocation4] sm:$0xf]
    %v27 = vld [vmem:[%s2] sm:$0x3]
    %v29 = vlaneseq
    %v30 = vshrl.u32 %v29, 7
    %v31 = vsub.s32 0, %v30
    %v32 = vrot.slane %v27, %v31
    %v33 = vlaneseq
    %v34 = vshrl.u32 %v33, 7
    %v35 = vsub.s32 1, %v34
    %v36 = vrot.slane %v27, %v35
    %v37 = vcombine.low %v32, %v36
    %v39 = vunpack.c.l.s4 1983009808
    %v40 = vunpack.c.0.s8 %v39
    %v41 = vlaneseq
    %v42 = vshrl.u32 %v41, 7
    %v43 = vsub.s32 %v40, %v42
    %v44 = vrot.slane %v37, %v43
    %v46 = vadd.f32 %v26, %v44
    %47 = vst [vmem:[#allocation7] sm:$0xf] %v46
    // Predicated region
    $region14: #{tpu_custom_call.1} parent=1 // pred_check
      _
    $region15: #{tpu_custom_call.1} parent=1 // pred_check_branch
      %49 = sbr.rel (0) target = $region17
    $region16: #{tpu_custom_call.1} parent=1 // pred_region
      %s51 = ssub.s32 64, 64
      %52 = vsyncadd [#allocation6], %s51
      %s54 = sshll.u32 [#allocation7], 4
      %s55 = int_to_ptr.vmem [resolvable:$true] %s54
      %57 = dma.vmem_to_hbm [thread:$0]  %s55, 64, %s3, [#allocation6]
    $region17: #{tpu_custom_call.1} parent=1 // pred_fallthru
      _
    // Predicated region
    $region18: #{tpu_custom_call.1} parent=1 // pred_check
      _
    $region19: #{tpu_custom_call.1} parent=1 // pred_check_branch
      %59 = sbr.rel (0) target = $region21
    $region20: #{tpu_custom_call.1} parent=1 // pred_region
      %60 = dma.done [#allocation6], 64
    $region21: #{tpu_custom_call.1} parent=1 // pred_fallthru
      _
    %61 = vsyncpa [#allocation5], 1
    %62 = vsyncpa [#allocation6], 1

</llo_original>
